<compile_context>
chip_gen: v5e
topology: v5e:2x2
jax: 0.10.0
libtpu: 0.0.40
codegen_flags: <defaults>
</compile_context>

<pallas_src>
import functools

import jax
import jax.numpy as jnp
from jax.experimental import pallas as pl
from jax.experimental.pallas import tpu as pltpu

_LANES = 128
_MAX_TILE_ROWS = 2048  # 1 MiB f32 per input block; 2 inputs x 2 buffers ~ 4 MiB VMEM


def _gt_kernel(l_ref, r_ref, o_ref, acc_ref, *, norm):
    """One grid step: accumulate relu(right - left)[**2] into a VMEM vector acc."""
    # Zero the running-sum accumulator at the start of every parallel slice.
    @pl.when(pl.program_id(1) == 0)
    def _():
        acc_ref[...] = jnp.zeros_like(acc_ref)

    diff = r_ref[...].astype(jnp.float32) - l_ref[...].astype(jnp.float32)
    viol = jnp.maximum(diff, 0.0)
    if norm == 2:
        viol = viol * viol
    # Block-shaped vector accumulator: pure VPU adds, no per-step cross-lane
    # reduce and no serializing scalar read-modify-write.
    acc_ref[...] += viol

    # Epilogue: fold the block accumulator down to one (8, 128) partial.
    @pl.when(pl.program_id(1) == pl.num_programs(1) - 1)
    def _():
        o_ref[0] = jnp.sum(acc_ref[...].reshape(-1, 8, _LANES), axis=0)


def gt_loss(left, right, norm=1):
    """Pallas TPU implementation of neuromancer GT.forward(left, right)."""
    assert norm in (1, 2)
    left = jnp.asarray(left)
    right = jnp.asarray(right)
    # Broadcast only when shapes actually differ (no-op otherwise).
    # TODO(synk): for very large broadcast operands, express the broadcast in
    # the index_map instead of materializing it here.
    if left.shape != right.shape:
        left, right = jnp.broadcast_arrays(left, right)

    dtype = jnp.promote_types(left.dtype, right.dtype)
    if not jnp.issubdtype(dtype, jnp.floating):
        dtype = jnp.float32
    # Keep storage dtype for the DMA (bf16 stays bf16); upcast inside kernel.
    left = left.astype(dtype)
    right = right.astype(dtype)

    n_elems = left.size
    lf = left.reshape(-1)
    rf = right.reshape(-1)

    # ---- tile sizing: lane-dense [rows, 128] slab, big blocks ----------------
    rows_min = -(-n_elems // _LANES)
    if rows_min <= _MAX_TILE_ROWS:
        tile_rows = ((rows_min + 15) // 16) * 16  # single block, 16-row aligned
        num_tiles = 1
    else:
        tile_rows = _MAX_TILE_ROWS
        num_tiles = -(-rows_min // tile_rows)

    # Two-way split onto a leading "parallel" grid axis (v7x megacore sharding).
    num_cores = 2 if num_tiles >= 2 else 1
    if num_tiles % num_cores:
        num_tiles += num_cores - (num_tiles % num_cores)
    tiles_per_core = num_tiles // num_cores

    padded = num_tiles * tile_rows * _LANES
    pad = padded - n_elems
    if pad:
        # Zero padding contributes nothing: relu(0 - 0) == 0 for both norms.
        lf = jnp.pad(lf, (0, pad))
        rf = jnp.pad(rf, (0, pad))
    rows = padded // _LANES
    l2d = lf.reshape(rows, _LANES)
    r2d = rf.reshape(rows, _LANES)

    def block_map(p, k):
        return (p * tiles_per_core + k, 0)

    kernel = functools.partial(_gt_kernel, norm=norm)

    partials = pl.pallas_call(
        kernel,
        out_shape=jax.ShapeDtypeStruct((num_cores, 8, _LANES), jnp.float32),
        grid_spec=pltpu.PrefetchScalarGridSpec(
            num_scalar_prefetch=0,
            grid=(num_cores, tiles_per_core),
            in_specs=[
                pl.BlockSpec((tile_rows, _LANES), block_map),
                pl.BlockSpec((tile_rows, _LANES), block_map),
            ],
            out_specs=pl.BlockSpec((1, 8, _LANES), lambda p, k: (p, 0, 0)),
            scratch_shapes=[pltpu.VMEM((tile_rows, _LANES), jnp.float32)],
        ),
        compiler_params=pltpu.CompilerParams(
            dimension_semantics=("parallel", "arbitrary"),
        ),
    )(l2d, r2d)

    # Tiny final reduction + mean normalization (Python float scale -> no
    # captured-constant issue, applied outside the kernel).
    return jnp.sum(partials) * (1.0 / n_elems)


def gt_loss_ref(left, right, norm=1):
    d = jnp.maximum(jnp.asarray(right) - jnp.asarray(left), 0.0)
    if norm == 2:
        d = d * d
    return jnp.mean(d)


if __name__ == "__main__":
    key = jax.random.PRNGKey(0)
    k1, k2, k3, k4, k5 = jax.random.split(key, 5)

    ok = True

    # Small NCHW-shaped inputs consistent with constraint-violation use.
    left_s = jax.random.normal(k1, (2, 4, 16, 16), dtype=jnp.float32)
    right_s = jax.random.normal(k2, (2, 4, 16, 16), dtype=jnp.float32)

    # Broadcasting case (right lower-bound shared across spatial rows).
    right_b = jax.random.normal(k3, (2, 4, 1, 16), dtype=jnp.float32)

    # A larger case to exercise the multi-tile / parallel-axis path.
    left_l = jax.random.normal(k4, (8, 16, 64, 64), dtype=jnp.float32)
    right_l = jax.random.normal(k5, (8, 16, 64, 64), dtype=jnp.float32)

    cases = [
        ("small", left_s, right_s),
        ("broadcast", left_s, right_b),
        ("large", left_l, right_l),
    ]
    for name, l, r in cases:
        for norm in (1, 2):
            out = jax.block_until_ready(gt_loss(l, r, norm=norm))
            ref = jax.block_until_ready(gt_loss_ref(l, r, norm=norm))
            if not jnp.allclose(out, ref, rtol=1e-4, atol=1e-6):
                ok = False
                print(f"MISMATCH case={name} norm={norm}: got {out}, want {ref}")

    if ok:
        print("KERNEL_OK")
</pallas_src>

<mosaic_0001>
module attributes {stable_mosaic.version = 11 : i64} {
  func.func @_gt_kernel(%arg0: i32, %arg1: i32, %arg2: memref<16x128xf32, #tpu.memory_space<vmem>>, %arg3: memref<16x128xf32, #tpu.memory_space<vmem>>, %arg4: memref<1x8x128xf32, #tpu.memory_space<vmem>>, %arg5: memref<16x128xf32, #tpu.memory_space<vmem>>) attributes {dimension_semantics = [#tpu.dimension_semantics<parallel>, #tpu.dimension_semantics<arbitrary>], iteration_bounds = array<i64: 1, 1>, scalar_prefetch = 0 : i64, scratch_operands = 1 : i64, tpu.core_type = #tpu.core_type<tc>, window_params = [{transform_indices = @transform_0, window_bounds = array<i64: 16, 128>}, {transform_indices = @transform_1, window_bounds = array<i64: 16, 128>}, {transform_indices = @transform_2, window_bounds = array<i64: 1, 8, 128>}]} {
    %c0_i32 = arith.constant 0 : i32
    %0 = arith.cmpi eq, %arg1, %c0_i32 : i32
    %1 = arith.extui %0 : i1 to i32
    %c0_i32_0 = arith.constant 0 : i32
    %2 = arith.cmpi ne, %1, %c0_i32_0 : i32
    scf.if %2 {
      %cst_10 = arith.constant 0.000000e+00 : f32
      %14 = vector.broadcast %cst_10 : f32 to vector<16x128xf32>
      %c0_11 = arith.constant 0 : index
      %c0_12 = arith.constant 0 : index
      %15 = vector.load %arg5[%c0_11, %c0_12] : memref<16x128xf32, #tpu.memory_space<vmem>>, vector<16x128xf32>
      tpu.vector_store %arg5[%c0_11, %c0_12], %14 {strides = array<i32>} : memref<16x128xf32, #tpu.memory_space<vmem>>, vector<16x128xf32>,
    } else {
    }
    %c0 = arith.constant 0 : index
    %c0_1 = arith.constant 0 : index
    %3 = vector.load %arg3[%c0, %c0_1] : memref<16x128xf32, #tpu.memory_space<vmem>>, vector<16x128xf32>
    %c0_2 = arith.constant 0 : index
    %c0_3 = arith.constant 0 : index
    %4 = vector.load %arg2[%c0_2, %c0_3] : memref<16x128xf32, #tpu.memory_space<vmem>>, vector<16x128xf32>
    %5 = arith.subf %3, %4 : vector<16x128xf32>
    %cst = arith.constant 0.000000e+00 : f32
    %6 = vector.broadcast %cst : f32 to vector<16x128xf32>
    %7 = arith.maximumf %5, %6 : vector<16x128xf32>
    %c0_4 = arith.constant 0 : index
    %c0_5 = arith.constant 0 : index
    %8 = vector.load %arg5[%c0_4, %c0_5] : memref<16x128xf32, #tpu.memory_space<vmem>>, vector<16x128xf32>
    %9 = arith.addf %8, %7 : vector<16x128xf32>
    %c0_6 = arith.constant 0 : index
    %c0_7 = arith.constant 0 : index
    %10 = vector.load %arg5[%c0_6, %c0_7] : memref<16x128xf32, #tpu.memory_space<vmem>>, vector<16x128xf32>
    tpu.vector_store %arg5[%c0_6, %c0_7], %9 {strides = array<i32>} : memref<16x128xf32, #tpu.memory_space<vmem>>, vector<16x128xf32>,
    %c0_i32_8 = arith.constant 0 : i32
    %11 = arith.cmpi eq, %arg1, %c0_i32_8 : i32
    %12 = arith.extui %11 : i1 to i32
    %c0_i32_9 = arith.constant 0 : i32
    %13 = arith.cmpi ne, %12, %c0_i32_9 : i32
    scf.if %13 {
      %c0_10 = arith.constant 0 : index
      %c0_11 = arith.constant 0 : index
      %14 = vector.load %arg5[%c0_10, %c0_11] : memref<16x128xf32, #tpu.memory_space<vmem>>, vector<16x128xf32>
      %15 = vector.shape_cast %14 : vector<16x128xf32> to vector<2x8x128xf32>
      %cst_12 = arith.constant dense<0.000000e+00> : vector<8x128xf32>
      %16 = vector.multi_reduction <add>, %15, %cst_12 [0] : vector<2x8x128xf32> to vector<8x128xf32>
      %c0_13 = arith.constant 0 : index
      %c0_14 = arith.constant 0 : index
      %c0_15 = arith.constant 0 : index
      %17 = vector.load %arg4[%c0_13, %c0_14, %c0_15] : memref<1x8x128xf32, #tpu.memory_space<vmem>>, vector<1x8x128xf32>
      %18 = vector.shape_cast %17 : vector<1x8x128xf32> to vector<8x128xf32>
      %19 = vector.shape_cast %16 : vector<8x128xf32> to vector<1x8x128xf32>
      tpu.vector_store %arg4[%c0_13, %c0_14, %c0_15], %19 {strides = array<i32>} : memref<1x8x128xf32, #tpu.memory_space<vmem>>, vector<1x8x128xf32>,
    } else {
    }
    return
  }
  func.func @transform_0(%arg0: i32, %arg1: i32) -> (i32, i32) {
    %c1_i32 = arith.constant 1 : i32
    %0 = arith.muli %arg0, %c1_i32 : i32
    %1 = arith.addi %0, %arg1 : i32
    %c0_i32 = arith.constant 0 : i32
    %c0_i32_0 = arith.constant 0 : i32
    return %1, %c0_i32 : i32, i32
  }
  func.func @transform_1(%arg0: i32, %arg1: i32) -> (i32, i32) {
    %c1_i32 = arith.constant 1 : i32
    %0 = arith.muli %arg0, %c1_i32 : i32
    %1 = arith.addi %0, %arg1 : i32
    %c0_i32 = arith.constant 0 : i32
    %c0_i32_0 = arith.constant 0 : i32
    return %1, %c0_i32 : i32, i32
  }
  func.func @transform_2(%arg0: i32, %arg1: i32) -> (i32, i32, i32) {
    %c0_i32 = arith.constant 0 : i32
    %c0_i32_0 = arith.constant 0 : i32
    %c0_i32_1 = arith.constant 0 : i32
    return %arg0, %c0_i32, %c0_i32_0 : i32, i32, i32
  }
}

</mosaic_0001>

<llo_original>
// kernel: tpu_custom_call.1
$region0: #{tpu_custom_call.1}
  #allocation0 [shape = 'u32[]', space=smem, size = 0x4, offset = 0x4, fixed_abs, tag = 'smem constant byte address 0x4 - core index']
  #allocation1 [shape = 'u32[72,128]{1,0:T(1,128)}', space=vmem, size = 0x9000, scoped, tag = 'internal scratch']
  #allocation2 [shape = 'f32[16,128]{1,0:T(8,128)}', space=vmem, size = 0x2000, scoped, tag = 'scratch operand']
  %s0 = inlined_call_operand.hbm [shape: f32[16,128], index: 0, kind: input, shape index: {}]
  %s1 = inlined_call_operand.hbm [shape: f32[16,128], index: 1, kind: input, shape index: {}]
  %s2 = inlined_call_operand.hbm [shape: f32[1,8,128], index: 2, kind: output, shape index: {}]
  %s3 = sld [smem:[#allocation0]]
  $region34: #{tpu_custom_call.1} parent=0
    _
  %s5 = ssub.s32 1, %s3
  %s6 = scalar_select 0, %s5, %s3
  $region1: #{tpu_custom_call.1} parent=0
    #allocation3 [shape = 'u8[8192]{0}', space=vmem, size = 0x2000, scoped, tag = 'input window, operand 0, single buffered']
    #allocation4 [shape = 's32[1]{0}', space=sflag, size = 0x4, scoped, tag = 'scoped memory for tpu_custom_call.1']
    #allocation5 [shape = 's32[1]{0}', space=sflag, size = 0x4, scoped, tag = 'scoped memory for tpu_custom_call.1']
    #allocation6 [shape = 'u8[8192]{0}', space=vmem, size = 0x2000, scoped, tag = 'input window, operand 1, single buffered']
    #allocation7 [shape = 's32[1]{0}', space=sflag, size = 0x4, scoped, tag = 'scoped memory for tpu_custom_call.1']
    #allocation8 [shape = 'u8[4096]{0}', space=vmem, size = 0x1000, scoped, tag = 'output window, operand 0, single buffered']
    %7 = vsyncpa [#allocation4], 0
    %8 = vsyncpa [#allocation7], 0
    %9 = vsyncpa [#allocation5], 0
    // Predicated region
    $region2: #{tpu_custom_call.1} parent=1 // pred_check
      _
    $region3: #{tpu_custom_call.1} parent=1 // pred_check_branch
      %11 = sbr.rel (0) target = $region5
    $region4: #{tpu_custom_call.1} parent=1 // pred_region
      %s12 = sadd.s32 0, 0
      %s13 = smul.u32 2, %s12
      %15 = vsyncadd [#allocation4], 0
      %s16 = smul.addr %s13, 8
      %s17 = scalar_lea.hbm %s0, %s16
      %s18 = sshll.u32 %s17, 4
      %s19 = int_to_ptr.hbm [resolvable:$true] %s18
      %s20 = sshll.u32 [#allocation3], 4
      %s21 = int_to_ptr.vmem [resolvable:$true] %s20
      %26 = dma.hbm_to_vmem [thread:$0]  %s19, 256, %s21, [#allocation4], 128, 128, 8
    $region5: #{tpu_custom_call.1} parent=1 // pred_fallthru
      _
    // Predicated region
    $region6: #{tpu_custom_call.1} parent=1 // pred_check
      _
    $region7: #{tpu_custom_call.1} parent=1 // pred_check_branch
      %28 = sbr.rel (0) target = $region9
    $region8: #{tpu_custom_call.1} parent=1 // pred_region
      %s29 = sadd.s32 0, 0
      %s30 = smul.u32 2, %s29
      %32 = vsyncadd [#allocation7], 0
      %s33 = smul.addr %s30, 8
      %s34 = scalar_lea.hbm %s1, %s33
      %s35 = sshll.u32 %s34, 4
      %s36 = int_to_ptr.hbm [resolvable:$true] %s35
      %s37 = sshll.u32 [#allocation6], 4
      %s38 = int_to_ptr.vmem [resolvable:$true] %s37
      %43 = dma.hbm_to_vmem [thread:$0]  %s36, 256, %s38, [#allocation7], 128, 128, 8
    $region9: #{tpu_custom_call.1} parent=1 // pred_fallthru
      _
    // Predicated region
    $region10: #{tpu_custom_call.1} parent=1 // pred_check
      _
    $region11: #{tpu_custom_call.1} parent=1 // pred_check_branch
      %45 = sbr.rel (0) target = $region13
    $region12: #{tpu_custom_call.1} parent=1 // pred_region
      %47 = dma.done [#allocation4], 256
    $region13: #{tpu_custom_call.1} parent=1 // pred_fallthru
      _
    // Predicated region
    $region14: #{tpu_custom_call.1} parent=1 // pred_check
      _
    $region15: #{tpu_custom_call.1} parent=1 // pred_check_branch
      %49 = sbr.rel (0) target = $region17
    $region16: #{tpu_custom_call.1} parent=1 // pred_region
      %51 = dma.done [#allocation7], 256
    $region17: #{tpu_custom_call.1} parent=1 // pred_fallthru
      _
    %s52 = sadd.s32 0, 0
    %s53 = smul.u32 2, %s52
    %s54 = sadd.s32 0, 0
    %s55 = smul.u32 2, %s54
    %p56 = scmp.eq.s32.totalorder 0, 0
    // Predicated region
    $region18: #{tpu_custom_call.1} parent=1 // pred_check
      %p57 = pneg %p56
    $region19: #{tpu_custom_call.1} parent=1 // pred_check_branch
      %59 = sbr.rel (%p57) target = $region21
    $region20: #{tpu_custom_call.1} parent=1 // pred_region
      %60 = vst [vmem:[#allocation2] sm:$0xff] 0.0
      %61 = vst [vmem:[#allocation2 + $0x8] sm:$0xff] 0.0
    $region21: #{tpu_custom_call.1} parent=1 // pred_fallthru
      _
    %v62 = vld [vmem:[#allocation6] sm:$0xff]
    %v63 = vld [vmem:[#allocation6 + $0x8] sm:$0xff]
    %v64 = vld [vmem:[#allocation3] sm:$0xff]
    %v65 = vld [vmem:[#allocation3 + $0x8] sm:$0xff]
    %v66 = vsub.f32 %v62, %v64
    %v67 = vsub.f32 %v63, %v65
    %v68 = vmax.f32 %v66, 0.0
    %v69 = vmax.f32 %v67, 0.0
    %v70 = vld [vmem:[#allocation2] sm:$0xff]
    %v71 = vld [vmem:[#allocation2 + $0x8] sm:$0xff]
    %v72 = vadd.f32 %v70, %v68
    %v73 = vadd.f32 %v71, %v69
    %74 = vst [vmem:[#allocation2] sm:$0xff] %v72
    %75 = vst [vmem:[#allocation2 + $0x8] sm:$0xff] %v73
    // Predicated region
    $region22: #{tpu_custom_call.1} parent=1 // pred_check
      %p76 = pneg %p56
    $region23: #{tpu_custom_call.1} parent=1 // pred_check_branch
      %78 = sbr.rel (%p76) target = $region25
    $region24: #{tpu_custom_call.1} parent=1 // pred_region
      %v79 = vld [vmem:[#allocation2] sm:$0xff]
      %v80 = vld [vmem:[#allocation2 + $0x8] sm:$0xff]
      %v81 = vadd.f32 %v79, %v80
      %82 = vst [vmem:[#allocation8] sm:$0xff] %v81
    $region25: #{tpu_custom_call.1} parent=1 // pred_fallthru
      _
    // Predicated region
    $region26: #{tpu_custom_call.1} parent=1 // pred_check
      _
    $region27: #{tpu_custom_call.1} parent=1 // pred_check_branch
      %84 = sbr.rel (0) target = $region29
    $region28: #{tpu_custom_call.1} parent=1 // pred_region
      %86 = vsyncadd [#allocation5], 0
      %s88 = sshll.u32 [#allocation8], 4
      %s89 = int_to_ptr.vmem [resolvable:$true] %s88
      %s90 = sshll.u32 %s2, 4
      %s91 = int_to_ptr.hbm [resolvable:$true] %s90
      %93 = dma.vmem_to_hbm [thread:$0]  %s89, 128, %s91, [#allocation5]
    $region29: #{tpu_custom_call.1} parent=1 // pred_fallthru
      _
    // Predicated region
    $region30: #{tpu_custom_call.1} parent=1 // pred_check
      _
    $region31: #{tpu_custom_call.1} parent=1 // pred_check_branch
      %95 = sbr.rel (0) target = $region33
    $region32: #{tpu_custom_call.1} parent=1 // pred_region
      %97 = dma.done [#allocation5], 128
    $region33: #{tpu_custom_call.1} parent=1 // pred_fallthru
      _
    %98 = vsyncpa [#allocation4], 1
    %99 = vsyncpa [#allocation7], 1
    %100 = vsyncpa [#allocation5], 1

</llo_original>
